<compile_context>
chip_gen: v5e
topology: v5e:2x2
jax: 0.10.0
libtpu: 0.0.40
codegen_flags: <defaults>
</compile_context>

<pallas_src>
import functools

import jax
import jax.numpy as jnp
from jax import lax
from jax.experimental import pallas as pl
from jax.experimental.pallas import tpu as pltpu

HIDDEN = 25
HIDDEN_PAD = 32          # pad 25 -> 32 (sublane multiple); padded units are inert zeros
MAX_TILE_B = 8192        # batch tile upper bound (sweepable); lane-aligned multiples of 128


def _round_up(x, m):
    return ((x + m - 1) // m) * m


def _pick_tile_b(batch):
    """Single exact block for small batches; otherwise >=2 big 128-multiple blocks."""
    if batch <= 256:
        return batch                              # block dims == array dims -> always legal
    half = -(-batch // 2)                         # ceil(batch/2): keep >= 2 blocks (v7x megacore)
    return min(MAX_TILE_B, _round_up(half, 128))


def _vmem_limit_bytes(tile_b, input_dim, two_h, two_out):
    item = 4  # float32
    x_tile = tile_b * input_dim * item
    h_tile = two_h * tile_b * item
    o_tile = two_out * tile_b * item
    weights = (two_h * input_dim + two_h + two_out * two_h + two_out) * item
    need = 2 * x_tile + 2 * o_tile + h_tile + weights   # double-buffered streams + intermediate
    return int(min(max(2 * need, 16 * 1024 * 1024), 64 * 1024 * 1024))


def _bifurcation_fused_kernel(x_ref, w1t_ref, b1t_ref, w2t_ref, b2t_ref, out_ref):
    x = x_ref[...]                                       # [tile_b, input_dim]
    # fused hidden layer (transposed): [2*HIDDEN_PAD, tile_b]
    h = lax.dot_general(
        w1t_ref[...], x,
        dimension_numbers=(((1,), (1,)), ((), ())),       # contract input_dim of both
        preferred_element_type=jnp.float32,
    ) + b1t_ref[...]                                      # bias [2H, 1] broadcasts over lanes
    h = jnp.maximum(h, 0.0)
    # fused block-diagonal output layer (transposed): [2*output_dim, tile_b] -> lane-dense store
    o = jnp.dot(w2t_ref[...], h, preferred_element_type=jnp.float32) + b2t_ref[...]
    o = jnp.maximum(o, 0.0)
    out_ref[...] = o.astype(out_ref.dtype)


@functools.partial(jax.jit, static_argnames=("output_dim",))
def bifurcation_forward(x, fused_params, *, output_dim):
    """x: [batch, input_dim] float32. Returns (out_a, out_b) like the torch module."""
    w1t, b1t, w2t, b2t = fused_params
    batch, input_dim = x.shape
    two_out = 2 * output_dim
    two_h = w1t.shape[0]

    tile_b = _pick_tile_b(batch)
    grid = (pl.cdiv(batch, tile_b),)                     # ragged last block handled by Pallas

    out_t = pl.pallas_call(
        _bifurcation_fused_kernel,
        out_shape=jax.ShapeDtypeStruct((two_out, batch), x.dtype),
        grid=grid,
        in_specs=[
            pl.BlockSpec((tile_b, input_dim), lambda i: (i, 0)),   # x: streamed per batch tile
            pl.BlockSpec(w1t.shape, lambda i: (0, 0)),             # W1ᵀ (resident)
            pl.BlockSpec(b1t.shape, lambda i: (0, 0)),             # b1 column
            pl.BlockSpec(w2t.shape, lambda i: (0, 0)),             # block-diag W2ᵀ
            pl.BlockSpec(b2t.shape, lambda i: (0, 0)),             # b2 column
        ],
        out_specs=pl.BlockSpec((two_out, tile_b), lambda i: (0, i)),   # lane-dense output
        compiler_params=pltpu.CompilerParams(
            dimension_semantics=("parallel",),           # megacore sharding on v7x
            vmem_limit_bytes=_vmem_limit_bytes(tile_b, input_dim, two_h, two_out),
        ),
    )(x, w1t, b1t, w2t, b2t)

    out_a_t = out_t[:output_dim]                         # [output_dim, batch]
    out_b_t = out_t[output_dim:]
    # torch .squeeze(-1): only drops the last axis if it is size 1
    if output_dim == 1:
        return out_a_t[0], out_b_t[0]
    return out_a_t.T, out_b_t.T


def init_raw_params(key, input_dim, output_dim):
    """PyTorch-Linear-style init: U(-1/sqrt(fan_in), 1/sqrt(fan_in)).

    Weights stored transposed relative to torch ([in, out]); biases as [1, out] rows.
    """
    keys = jax.random.split(key, 8)

    def linear(kw, kb, fan_in, fan_out):
        bound = 1.0 / jnp.sqrt(jnp.float32(fan_in))
        w = jax.random.uniform(kw, (fan_in, fan_out), jnp.float32, -bound, bound)
        b = jax.random.uniform(kb, (1, fan_out), jnp.float32, -bound, bound)
        return w, b

    w1a, b1a = linear(keys[0], keys[1], input_dim, HIDDEN)
    w2a, b2a = linear(keys[2], keys[3], HIDDEN, output_dim)
    w1b, b1b = linear(keys[4], keys[5], input_dim, HIDDEN)
    w2b, b2b = linear(keys[6], keys[7], HIDDEN, output_dim)
    return (w1a, b1a, w2a, b2a, w1b, b1b, w2b, b2b)


def fuse_params(raw_params, output_dim):
    """Pack per-branch params into the fused, hidden-padded, TRANSPOSED layout."""
    w1a, b1a, w2a, b2a, w1b, b1b, w2b, b2b = raw_params
    pad_h = HIDDEN_PAD - HIDDEN

    def w1_t(w):   # [in, 25] -> [32, in] (zero rows -> padded hidden units stay 0)
        return jnp.pad(w.T, ((0, pad_h), (0, 0)))

    def b1_t(b):   # [1, 25] -> [32, 1]
        return jnp.pad(b.reshape(-1, 1), ((0, pad_h), (0, 0)))

    def w2_t(w):   # [25, out] -> [out, 32] (zero cols for the inert padded units)
        return jnp.pad(w.T, ((0, 0), (0, pad_h)))

    # Fused first layer (transposed): [2*HIDDEN_PAD, input_dim], bias [2*HIDDEN_PAD, 1]
    w1t = jnp.concatenate([w1_t(w1a), w1_t(w1b)], axis=0)
    b1t = jnp.concatenate([b1_t(b1a), b1_t(b1b)], axis=0)

    # Fused block-diagonal second layer (transposed): [2*output_dim, 2*HIDDEN_PAD]
    zeros = jnp.zeros((output_dim, HIDDEN_PAD), jnp.float32)
    w2t = jnp.concatenate([
        jnp.concatenate([w2_t(w2a), zeros], axis=1),     # branch a rows
        jnp.concatenate([zeros, w2_t(w2b)], axis=1),     # branch b rows
    ], axis=0)
    b2t = jnp.concatenate([b2a.reshape(-1, 1), b2b.reshape(-1, 1)], axis=0)  # [2*out, 1]
    return (w1t, b1t, w2t, b2t)


def _reference(x, raw_params):
    w1a, b1a, w2a, b2a, w1b, b1b, w2b, b2b = raw_params
    ha = jnp.maximum(x @ w1a + b1a, 0.0)
    oa = jnp.maximum(ha @ w2a + b2a, 0.0)
    hb = jnp.maximum(x @ w1b + b1b, 0.0)
    ob = jnp.maximum(hb @ w2b + b2b, 0.0)
    return oa.squeeze(-1), ob.squeeze(-1)


if __name__ == "__main__":
    input_dim = 32
    output_dim = 1

    key = jax.random.PRNGKey(0)
    kx1, kx2, kp = jax.random.split(key, 3)

    raw_params = init_raw_params(kp, input_dim, output_dim)
    fused_params = fuse_params(raw_params, output_dim)

    # Small batch: single exact block.
    batch = 8
    x = jax.random.normal(kx1, (batch, input_dim), jnp.float32)
    out_a, out_b = bifurcation_forward(x, fused_params, output_dim=output_dim)
    jax.block_until_ready((out_a, out_b))
    ref_a, ref_b = _reference(x, raw_params)
    assert out_a.shape == (batch,) and out_b.shape == (batch,)
    assert jnp.allclose(out_a, ref_a, atol=1e-5), "branch a mismatch (small batch)"
    assert jnp.allclose(out_b, ref_b, atol=1e-5), "branch b mismatch (small batch)"

    # Larger batch: exercises the multi-block grid + ragged last block (no host-side pad).
    batch2 = 300
    x2 = jax.random.normal(kx2, (batch2, input_dim), jnp.float32)
    out_a2, out_b2 = bifurcation_forward(x2, fused_params, output_dim=output_dim)
    jax.block_until_ready((out_a2, out_b2))
    ref_a2, ref_b2 = _reference(x2, raw_params)
    assert out_a2.shape == (batch2,) and out_b2.shape == (batch2,)
    assert jnp.allclose(out_a2, ref_a2, atol=1e-5), "branch a mismatch (ragged batch)"
    assert jnp.allclose(out_b2, ref_b2, atol=1e-5), "branch b mismatch (ragged batch)"

    print("KERNEL_OK")
</pallas_src>

<mosaic_0001>
module attributes {stable_mosaic.version = 11 : i64} {
  func.func @_bifurcation_fused_kernel(%arg0: i32, %arg1: memref<8x32xf32, #tpu.memory_space<vmem>>, %arg2: memref<64x32xf32, #tpu.memory_space<vmem>>, %arg3: memref<64x1xf32, #tpu.memory_space<vmem>>, %arg4: memref<2x64xf32, #tpu.memory_space<vmem>>, %arg5: memref<2x1xf32, #tpu.memory_space<vmem>>, %arg6: memref<2x8xf32, #tpu.memory_space<vmem>>) attributes {dimension_semantics = [#tpu.dimension_semantics<parallel>], iteration_bounds = array<i64: 1>, scalar_prefetch = 0 : i64, scratch_operands = 0 : i64, tpu.core_type = #tpu.core_type<tc>, window_params = [{transform_indices = @transform_0, window_bounds = array<i64: 8, 32>}, {pipeline_mode = #tpu.pipeline_mode<synchronous>, transform_indices = @transform_1, window_bounds = array<i64: 64, 32>}, {pipeline_mode = #tpu.pipeline_mode<synchronous>, transform_indices = @transform_2, window_bounds = array<i64: 64, 1>}, {pipeline_mode = #tpu.pipeline_mode<synchronous>, transform_indices = @transform_3, window_bounds = array<i64: 2, 64>}, {pipeline_mode = #tpu.pipeline_mode<synchronous>, transform_indices = @transform_4, window_bounds = array<i64: 2, 1>}, {transform_indices = @transform_5, window_bounds = array<i64: 2, 8>}]} {
    %c0 = arith.constant 0 : index
    %c0_0 = arith.constant 0 : index
    %0 = vector.load %arg1[%c0, %c0_0] : memref<8x32xf32, #tpu.memory_space<vmem>>, vector<8x32xf32>
    %c0_1 = arith.constant 0 : index
    %c0_2 = arith.constant 0 : index
    %1 = vector.load %arg2[%c0_1, %c0_2] : memref<64x32xf32, #tpu.memory_space<vmem>>, vector<64x32xf32>
    %cst = arith.constant dense<0.000000e+00> : vector<64x8xf32>
    %2 = tpu.matmul %1, %0, %cst {dimension_numbers = #tpu.dot_dimension_numbers<[1], [1], [0], [0], [0, 0, 1, 0], [], []>} : vector<64x32xf32>, vector<8x32xf32>, vector<64x8xf32> -> vector<64x8xf32>
    %c0_3 = arith.constant 0 : index
    %c0_4 = arith.constant 0 : index
    %3 = vector.load %arg3[%c0_3, %c0_4] : memref<64x1xf32, #tpu.memory_space<vmem>>, vector<64x1xf32>
    %4 = vector.broadcast %3 : vector<64x1xf32> to vector<64x8xf32>
    %5 = arith.addf %2, %4 : vector<64x8xf32>
    %cst_5 = arith.constant 0.000000e+00 : f32
    %6 = vector.broadcast %cst_5 : f32 to vector<64x8xf32>
    %7 = arith.maximumf %5, %6 : vector<64x8xf32>
    %c0_6 = arith.constant 0 : index
    %c0_7 = arith.constant 0 : index
    %8 = vector.load %arg4[%c0_6, %c0_7] : memref<2x64xf32, #tpu.memory_space<vmem>>, vector<2x64xf32>
    %cst_8 = arith.constant dense<0.000000e+00> : vector<2x8xf32>
    %9 = tpu.matmul %8, %7, %cst_8 {dimension_numbers = #tpu.dot_dimension_numbers<[1], [0], [0], [1], [0, 0, 1, 1], [], []>} : vector<2x64xf32>, vector<64x8xf32>, vector<2x8xf32> -> vector<2x8xf32>
    %c0_9 = arith.constant 0 : index
    %c0_10 = arith.constant 0 : index
    %10 = vector.load %arg5[%c0_9, %c0_10] : memref<2x1xf32, #tpu.memory_space<vmem>>, vector<2x1xf32>
    %11 = vector.broadcast %10 : vector<2x1xf32> to vector<2x8xf32>
    %12 = arith.addf %9, %11 : vector<2x8xf32>
    %cst_11 = arith.constant 0.000000e+00 : f32
    %13 = vector.broadcast %cst_11 : f32 to vector<2x8xf32>
    %14 = arith.maximumf %12, %13 : vector<2x8xf32>
    %c0_12 = arith.constant 0 : index
    %c0_13 = arith.constant 0 : index
    %15 = vector.load %arg6[%c0_12, %c0_13] : memref<2x8xf32, #tpu.memory_space<vmem>>, vector<2x8xf32>
    tpu.vector_store %arg6[%c0_12, %c0_13], %14 {strides = array<i32>} : memref<2x8xf32, #tpu.memory_space<vmem>>, vector<2x8xf32>,
    return
  }
  func.func @transform_0(%arg0: i32) -> (i32, i32) {
    %c0_i32 = arith.constant 0 : i32
    %c0_i32_0 = arith.constant 0 : i32
    return %arg0, %c0_i32 : i32, i32
  }
  func.func @transform_1(%arg0: i32) -> (i32, i32) {
    %c0_i32 = arith.constant 0 : i32
    %c0_i32_0 = arith.constant 0 : i32
    %c0_i32_1 = arith.constant 0 : i32
    return %c0_i32, %c0_i32_0 : i32, i32
  }
  func.func @transform_2(%arg0: i32) -> (i32, i32) {
    %c0_i32 = arith.constant 0 : i32
    %c0_i32_0 = arith.constant 0 : i32
    %c0_i32_1 = arith.constant 0 : i32
    return %c0_i32, %c0_i32_0 : i32, i32
  }
  func.func @transform_3(%arg0: i32) -> (i32, i32) {
    %c0_i32 = arith.constant 0 : i32
    %c0_i32_0 = arith.constant 0 : i32
    %c0_i32_1 = arith.constant 0 : i32
    return %c0_i32, %c0_i32_0 : i32, i32
  }
  func.func @transform_4(%arg0: i32) -> (i32, i32) {
    %c0_i32 = arith.constant 0 : i32
    %c0_i32_0 = arith.constant 0 : i32
    %c0_i32_1 = arith.constant 0 : i32
    return %c0_i32, %c0_i32_0 : i32, i32
  }
  func.func @transform_5(%arg0: i32) -> (i32, i32) {
    %c0_i32 = arith.constant 0 : i32
    %c0_i32_0 = arith.constant 0 : i32
    return %c0_i32, %arg0 : i32, i32
  }
}

</mosaic_0001>

<llo_original>
// kernel: bifurcation_forward.1
$region0: #{bifurcation_forward.1}
  #allocation0 [shape = 'u32[]', space=smem, size = 0x4, offset = 0x4, fixed_abs, tag = 'smem constant byte address 0x4 - core index']
  #allocation1 [shape = 'u32[72,128]{1,0:T(1,128)}', space=vmem, size = 0x9000, scoped, tag = 'internal scratch']
  %s0 = inlined_call_operand.vmem [shape: f32[8,32], index: 0, kind: input, shape index: {}]
  %s1 = inlined_call_operand.vmem [shape: f32[64,32], index: 1, kind: input, shape index: {}]
  %s2 = inlined_call_operand.vmem [shape: f32[64,1], index: 2, kind: input, shape index: {}]
  %s3 = inlined_call_operand.vmem [shape: f32[2,64], index: 3, kind: input, shape index: {}]
  %s4 = inlined_call_operand.vmem [shape: f32[2,1], index: 4, kind: input, shape index: {}]
  %s5 = inlined_call_operand.vmem [shape: f32[2,8], index: 5, kind: output, shape index: {}]
  %s6 = sld [smem:[#allocation0]]
  $region30: #{bifurcation_forward.1} parent=0
    _
  %s8 = ssub.s32 1, %s6
  %s9 = scalar_select 0, %s8, %s6
  // Predicated region
  $region2: #{bifurcation_forward.1} parent=0 // pred_check
    _
  $region3: #{bifurcation_forward.1} parent=0 // pred_check_branch
    %11 = sbr.rel (0) target = $region5
  $region4: #{bifurcation_forward.1} parent=0 // pred_region
    _
  $region5: #{bifurcation_forward.1} parent=0 // pred_fallthru
    _
  // Predicated region
  $region6: #{bifurcation_forward.1} parent=0 // pred_check
    _
  $region7: #{bifurcation_forward.1} parent=0 // pred_check_branch
    %13 = sbr.rel (0) target = $region9
  $region8: #{bifurcation_forward.1} parent=0 // pred_region
    _
  $region9: #{bifurcation_forward.1} parent=0 // pred_fallthru
    _
  // Predicated region
  $region10: #{bifurcation_forward.1} parent=0 // pred_check
    _
  $region11: #{bifurcation_forward.1} parent=0 // pred_check_branch
    %15 = sbr.rel (0) target = $region13
  $region12: #{bifurcation_forward.1} parent=0 // pred_region
    _
  $region13: #{bifurcation_forward.1} parent=0 // pred_fallthru
    _
  // Predicated region
  $region14: #{bifurcation_forward.1} parent=0 // pred_check
    _
  $region15: #{bifurcation_forward.1} parent=0 // pred_check_branch
    %17 = sbr.rel (0) target = $region17
  $region16: #{bifurcation_forward.1} parent=0 // pred_region
    _
  $region17: #{bifurcation_forward.1} parent=0 // pred_fallthru
    _
  // Predicated region
  $region18: #{bifurcation_forward.1} parent=0 // pred_check
    _
  $region19: #{bifurcation_forward.1} parent=0 // pred_check_branch
    %19 = sbr.rel (0) target = $region21
  $region20: #{bifurcation_forward.1} parent=0 // pred_region
    _
  $region21: #{bifurcation_forward.1} parent=0 // pred_fallthru
    _
  %v20 = vld [vmem:[%s0] sm:$0xff]
  %v21 = vld [vmem:[%s1] sm:$0xff]
  %v22 = vld [vmem:[%s1 + $0x8] sm:$0xff]
  %v23 = vld [vmem:[%s1 + $0x10] sm:$0xff]
  %v24 = vld [vmem:[%s1 + $0x18] sm:$0xff]
  %v25 = vld [vmem:[%s1 + $0x20] sm:$0xff]
  %v26 = vld [vmem:[%s1 + $0x28] sm:$0xff]
  %v27 = vld [vmem:[%s1 + $0x30] sm:$0xff]
  %v28 = vld [vmem:[%s1 + $0x38] sm:$0xff]
  %v29 = vld [vmem:[%s2] sm:$0xff]
  %v30 = vld [vmem:[%s2 + $0x8] sm:$0xff]
  %v31 = vld [vmem:[%s2 + $0x10] sm:$0xff]
  %v32 = vld [vmem:[%s2 + $0x18] sm:$0xff]
  %v33 = vld [vmem:[%s2 + $0x20] sm:$0xff]
  %v34 = vld [vmem:[%s2 + $0x28] sm:$0xff]
  %v35 = vld [vmem:[%s2 + $0x30] sm:$0xff]
  %v36 = vld [vmem:[%s2 + $0x38] sm:$0xff]
  %38 = vset.pattern.permute.xlu0 0
  %39 = vperm.xlu0 %38, %v29
  %v40 = vpop.permute.xlu0 %39
  %43 = vset.pattern.permute.xlu0 0
  %44 = vperm.xlu0 %43, %v30
  %v45 = vpop.permute.xlu0 %44
  %48 = vset.pattern.permute.xlu0 0
  %49 = vperm.xlu0 %48, %v31
  %v50 = vpop.permute.xlu0 %49
  %53 = vset.pattern.permute.xlu0 0
  %54 = vperm.xlu0 %53, %v32
  %v55 = vpop.permute.xlu0 %54
  %58 = vset.pattern.permute.xlu0 0
  %59 = vperm.xlu0 %58, %v33
  %v60 = vpop.permute.xlu0 %59
  %63 = vset.pattern.permute.xlu0 0
  %64 = vperm.xlu0 %63, %v34
  %v65 = vpop.permute.xlu0 %64
  %68 = vset.pattern.permute.xlu0 0
  %69 = vperm.xlu0 %68, %v35
  %v70 = vpop.permute.xlu0 %69
  %73 = vset.pattern.permute.xlu0 0
  %74 = vperm.xlu0 %73, %v36
  %v75 = vpop.permute.xlu0 %74
  %vm77 = vcmask 261120
  %v79 = vsel %vm77, %v21, 0
  %v82 = vsel %vm77, %v22, 0
  %v85 = vsel %vm77, %v23, 0
  %v88 = vsel %vm77, %v24, 0
  %v91 = vsel %vm77, %v25, 0
  %v94 = vsel %vm77, %v26, 0
  %v97 = vsel %vm77, %v27, 0
  %v100 = vsel %vm77, %v28, 0
  %v103 = vsel %vm77, %v20, 0
  %105 = vmatpush.xpose.msra.mxu0 0.0
  %106 = vmatpush.xpose.msra.mxu0 0.0
  %107 = vmatpush.xpose.msra.mxu0 0.0
  %108 = vmatpush.xpose.msra.mxu0 0.0
  %109 = vmatpush.xpose.msra.mxu0 0.0
  %110 = vmatpush.xpose.msra.mxu0 0.0
  %111 = vmatpush.xpose.msra.mxu0 0.0
  %112 = vmatpush.xpose.msra.mxu0 0.0
  %113 = vmatpush.xpose.msra.mxu0 0.0
  %114 = vmatpush.xpose.msra.mxu0 0.0
  %115 = vmatpush.xpose.msra.mxu0 0.0
  %116 = vmatpush.xpose.msra.mxu0 0.0
  %117 = vmatpush.xpose.msra.mxu0 0.0
  %118 = vmatpush.xpose.msra.mxu0 0.0
  %119 = vmatpush.xpose.msra.mxu0 0.0
  %120 = vmatpush.xpose.msra.mxu0 %v103
  %121 = vmatmul.f32.gmra.mxu0 %v79
  %v122 = vpop.f32.mrf.mxu0
  %v123 = vadd.f32 %v40, %v122
  %124 = vmatmul.f32.gmra.mxu0 %v82
  %v125 = vpop.f32.mrf.mxu0
  %v126 = vadd.f32 %v45, %v125
  %127 = vmatmul.f32.gmra.mxu0 %v85
  %v128 = vpop.f32.mrf.mxu0
  %v129 = vadd.f32 %v50, %v128
  %130 = vmatmul.f32.gmra.mxu0 %v88
  %v131 = vpop.f32.mrf.mxu0
  %v132 = vadd.f32 %v55, %v131
  %133 = vmatmul.f32.gmra.mxu0 %v91
  %v134 = vpop.f32.mrf.mxu0
  %v135 = vadd.f32 %v60, %v134
  %136 = vmatmul.f32.gmra.mxu0 %v94
  %v137 = vpop.f32.mrf.mxu0
  %v138 = vadd.f32 %v65, %v137
  %139 = vmatmul.f32.gmra.mxu0 %v97
  %v140 = vpop.f32.mrf.mxu0
  %v141 = vadd.f32 %v70, %v140
  %142 = vmatmul.f32.gmra.mxu0 %v100
  %v143 = vpop.f32.mrf.mxu0
  %v144 = vadd.f32 %v75, %v143
  %145 = vdwg.mxu0
  %v146 = vmax.f32 %v123, 0.0
  %v147 = vmax.f32 %v126, 0.0
  %v148 = vmax.f32 %v129, 0.0
  %v149 = vmax.f32 %v132, 0.0
  %v150 = vmax.f32 %v135, 0.0
  %v151 = vmax.f32 %v138, 0.0
  %v152 = vmax.f32 %v141, 0.0
  %v153 = vmax.f32 %v144, 0.0
  %v154 = vld [vmem:[%s3] sm:$0x3]
  %v155 = vld [vmem:[%s4] sm:$0x3]
  %157 = vset.pattern.permute.xlu0 0
  %158 = vperm.xlu0 %157, %v155
  %v159 = vpop.permute.xlu0 %158
  %vm161 = vcmask 523264
  %v163 = vsel %vm161, %v154, 0
  %165 = vmatpush.msra.mxu0 0.0
  %166 = vmatpush.msra.mxu0 0.0
  %167 = vmatpush.msra.mxu0 0.0
  %168 = vmatpush.msra.mxu0 0.0
  %169 = vmatpush.msra.mxu0 0.0
  %170 = vmatpush.msra.mxu0 0.0
  %171 = vmatpush.msra.mxu0 0.0
  %172 = vmatpush.msra.mxu0 0.0
  %173 = vmatpush.msra.mxu0 %v153
  %174 = vmatpush.msra.mxu0 %v152
  %175 = vmatpush.msra.mxu0 %v151
  %176 = vmatpush.msra.mxu0 %v150
  %177 = vmatpush.msra.mxu0 %v149
  %178 = vmatpush.msra.mxu0 %v148
  %179 = vmatpush.msra.mxu0 %v147
  %180 = vmatpush.msra.mxu0 %v146
  %181 = vmatmul.f32.gmra.mxu0 %v163
  %v182 = vpop.f32.mrf.mxu0
  %v183 = vadd.f32 %v159, %v182
  %184 = vdwg.mxu0
  %v185 = vmax.f32 %v183, 0.0
  %vm186 = vcmask 58368
  %187 = vst.msk [vmem:[%s5] sm:$0x3] %vm186, %v185
  // Predicated region
  $region22: #{bifurcation_forward.1} parent=0 // pred_check
    _
  $region23: #{bifurcation_forward.1} parent=0 // pred_check_branch
    %189 = sbr.rel (0) target = $region25
  $region24: #{bifurcation_forward.1} parent=0 // pred_region
    _
  $region25: #{bifurcation_forward.1} parent=0 // pred_fallthru
    _
  // Predicated region
  $region26: #{bifurcation_forward.1} parent=0 // pred_check
    _
  $region27: #{bifurcation_forward.1} parent=0 // pred_check_branch
    %191 = sbr.rel (0) target = $region29
  $region28: #{bifurcation_forward.1} parent=0 // pred_region
    _
  $region29: #{bifurcation_forward.1} parent=0 // pred_fallthru
    _

</llo_original>
